<compile_context>
chip_gen: v5e
topology: v5e:2x2
jax: 0.10.0
libtpu: 0.0.40
codegen_flags: <defaults>
</compile_context>

<pallas_src>
import jax
import jax.numpy as jnp
from jax.experimental import pallas as pl
from jax.experimental.pallas import tpu as pltpu

_MIB = 1024 * 1024


def _round_up(x, m):
    return ((x + m - 1) // m) * m


def _largest_divisor_leq(n, cap):
    cap = max(1, min(n, int(cap)))
    for d in range(cap, 0, -1):
        if n % d == 0:
            return d
    return 1


def _vmem_capacity_bytes():
    """Physical VMEM of the local TPU; conservative (v7x-like) fallback."""
    try:
        info = pltpu.get_tpu_info()
        cap = int(getattr(info, "vmem_capacity_bytes", 0))
        if cap > 0:
            return cap
    except Exception:
        pass
    return 64 * _MIB


def _make_cam_kernel(c_real, c_pad, separate_attn):
    def kernel(gamma_ref, x_ref, o_ref, energy_ref, *scratch):
        # grid = (B // Bt, 2, Kn): (batch group, phase, spatial chunk)
        # gamma_ref: SMEM (1,) f32
        # x_ref / o_ref: VMEM (Bt, Cp, Nt) tiles in the input's native dtype
        # energy_ref: VMEM (Bt, Cp, Cp) f32 accumulator (persists across steps)
        # optional attn scratch: VMEM (Bt, Cp, Cp) native-dtype attention
        attn_ref = scratch[0] if separate_attn else None
        p = pl.program_id(1)
        k = pl.program_id(2)

        @pl.when(p == 0)
        def _accumulate_energy():
            @pl.when(k == 0)
            def _init():
                energy_ref[...] = jnp.zeros_like(energy_ref)

            xc = x_ref[...]  # native dtype -> bf16 MXU fast path when input is bf16
            # TODO(synk): check the Mosaic dump for a standalone (Cp, Nt) vxpose
            # feeding this X @ X^T (both operands contract their minor dim); if
            # it binds the vex/XLU slot, stage a pre-transposed copy once per
            # chunk, or exploit energy symmetry on v5e where large-C bf16 is
            # MXU-bound.
            energy_ref[...] += jnp.einsum(
                "bcn,bdn->bcd", xc, xc, preferred_element_type=jnp.float32)

        @pl.when(p == 1)
        def _apply_attention():
            attn_store = attn_ref if separate_attn else energy_ref

            @pl.when(k == 0)
            def _softmax():
                energy = energy_ref[...]  # (Bt, Cp, Cp) f32
                # softmax(rowmax(E) - E) over last axis == exp(rowmin(E) - E)/sum
                if c_pad != c_real:
                    # Channels were zero-padded to the sublane multiple; padded
                    # columns must not enter the row min nor the denominator.
                    valid = jax.lax.broadcasted_iota(
                        jnp.int32, energy.shape, 2) < c_real
                    row_min = jnp.min(
                        jnp.where(valid, energy, jnp.inf), axis=-1, keepdims=True)
                    expo = jnp.minimum(
                        jnp.where(valid, row_min - energy, -jnp.inf), 0.0)
                else:
                    row_min = jnp.min(energy, axis=-1, keepdims=True)
                    expo = row_min - energy
                e = jnp.exp(expo)
                denom = jnp.sum(e, axis=-1, keepdims=True)
                attn = e * pl.reciprocal(denom, approx=True)
                attn_store[...] = attn.astype(attn_store.dtype)

            xc = x_ref[...]                                      # (Bt, Cp, Nt)
            attn = attn_store[...].astype(xc.dtype)
            out = jnp.einsum("bcd,bdn->bcn", attn, xc,
                             preferred_element_type=jnp.float32)  # f32
            gamma = gamma_ref[0]
            # Residual add in the native dtype (no (Bt,Cp,Nt) f32 upcast of xc).
            o_ref[...] = (gamma * out).astype(o_ref.dtype) + xc

    return kernel


def _choose_tiling(B, c_pad, N, itemsize, tile_budget, two_cores):
    """Pick (bt, nt, kn, n_pad, separate_attn).

    VMEM accounting: x and out tiles are double-buffered by the pipeline
    (2 buffers each -> 4 * bt * Cp * nt * itemsize total); the (bt, Cp, Cp)
    energy / attention scratch is single-buffered (persists across grid steps).
    """
    energy_b = c_pad * c_pad * 4
    attn_b = c_pad * c_pad * itemsize
    # On 2-TensorCore chips keep the "parallel" batch-group axis >= 2 so the
    # second core is not idle.
    bt_cap_cores = (B // 2) if (two_cores and B >= 2) else B

    # Single-pass path (kn == 1): whole spatial extent resident per step, so x
    # is read from HBM exactly once per batch element (block index unchanged
    # between phase 0 and phase 1). N is NOT padded on this path.
    for separate_attn in (True, False):
        per_b = (4 * c_pad * N * itemsize
                 + energy_b + (attn_b if separate_attn else 0))
        if per_b <= tile_budget:
            bt = _largest_divisor_leq(B, min(bt_cap_cores, tile_budget // per_b))
            return bt, N, 1, N, separate_attn

    # Chunked path: bt == 1, sweep the spatial axis in lane-dense 128-multiple
    # chunks. Scratch bytes are subtracted from the budget before sizing nt.
    # If VMEM is tight (large C), the separate attention scratch is dropped and
    # the softmax result is kept in energy_ref (cast per chunk at the matmul).
    for separate_attn in (True, False):
        tiles_budget = tile_budget - energy_b - (attn_b if separate_attn else 0)
        nt = (tiles_budget // (4 * c_pad * itemsize)) // 128 * 128
        if nt >= 128:
            nt = min(nt, _round_up(N, 128))
            n_pad = _round_up(N, nt)
            return 1, nt, n_pad // nt, n_pad, separate_attn

    # Fallback for extreme C: minimal footprint (may exceed the budget).
    n_pad = _round_up(N, 128)
    return 1, 128, n_pad // 128, n_pad, False


def cam_module(x, gamma, *, tile_budget_bytes=None):
    """Channel attention module forward pass.

    Args:
      x:     (B, C, H, W) array (NCHW, same convention as the PyTorch module)
      gamma: (1,) learnable scale (zeros-initialized in the reference)
    Returns:
      (B, C, H, W) array: gamma * (softmax-channel-attention @ x) + x
    """
    B, C, H, W = x.shape
    N = H * W
    itemsize = jnp.dtype(x.dtype).itemsize

    # ---- per-chip VMEM policy ------------------------------------------------
    vmem_cap = _vmem_capacity_bytes()
    # Heuristic: <= 80 MiB physical VMEM => v7x-like (64 MiB per TC, 2 TCs/chip);
    # otherwise v5e/v6e-like (128 MiB VMEM, single TC).
    if vmem_cap <= 80 * _MIB:
        two_cores = True
        vmem_request_cap = min(vmem_cap - 12 * _MIB, 52 * _MIB)  # headroom on v7x
        default_budget = 24 * _MIB
    else:
        two_cores = False
        vmem_request_cap = min(vmem_cap - 28 * _MIB, 100 * _MIB)
        default_budget = 40 * _MIB
    if tile_budget_bytes is None:
        tile_budget_bytes = default_budget
    tile_budget_bytes = min(int(tile_budget_bytes), vmem_request_cap - 4 * _MIB)

    # ---- layout: pad channels to the dtype sublane multiple -------------------
    sublane = max(1, 32 // itemsize)          # 8 (f32), 16 (bf16), 32 (int8)
    c_pad = _round_up(C, sublane)

    bt, nt, kn, n_pad, separate_attn = _choose_tiling(
        B, c_pad, N, itemsize, tile_budget_bytes, two_cores)

    # ---- wrapper-side plumbing -------------------------------------------------
    x_flat = x.reshape(B, C, N)
    if c_pad != C or n_pad != N:
        # NOTE: this pad is a separate XLA op that rewrites the whole (B, C, N)
        # tensor in HBM (one extra read+write). It only fires when C is not
        # sublane-aligned or the chunked path needs a 128-multiple spatial tile;
        # the single-pass path (kn == 1) never pads N. Zero rows/columns do not
        # change the energy, and padded outputs are sliced off below.
        x_flat = jnp.pad(x_flat, ((0, 0), (0, c_pad - C), (0, n_pad - N)))
    gamma = jnp.asarray(gamma, dtype=jnp.float32).reshape((1,))

    scratch_shapes = [pltpu.VMEM((bt, c_pad, c_pad), jnp.float32)]   # energy (f32)
    if separate_attn:
        scratch_shapes.append(pltpu.VMEM((bt, c_pad, c_pad), x.dtype))  # attention

    # Scoped VMEM sized to the actual residency: double-buffered x/out tiles
    # (4x) + single-buffered scratch (1x) + Mosaic internal headroom.
    tile_bytes = 4 * bt * c_pad * nt * itemsize
    scratch_bytes = bt * (c_pad * c_pad * 4
                          + (c_pad * c_pad * itemsize if separate_attn else 0))
    needed = tile_bytes + scratch_bytes + 2 * _MIB
    vmem_limit = int(min(max(needed, 32 * _MIB), vmem_request_cap))

    out_flat = pl.pallas_call(
        _make_cam_kernel(C, c_pad, separate_attn),
        out_shape=jax.ShapeDtypeStruct((B, c_pad, n_pad), x.dtype),
        grid_spec=pltpu.PrefetchScalarGridSpec(
            num_scalar_prefetch=0,
            grid=(B // bt, 2, kn),
            in_specs=[
                pl.BlockSpec(memory_space=pltpu.MemorySpace.SMEM),          # gamma
                pl.BlockSpec((bt, c_pad, nt), lambda g, p, k: (g, 0, k)),    # x chunk
            ],
            # Phase 0 never writes the output; pin its (unwritten) block to
            # chunk 0 (p*k == 0 while p == 0) so the block index only changes
            # after (p=1, k=0) has fully written it -> no stale flush to HBM.
            out_specs=pl.BlockSpec((bt, c_pad, nt), lambda g, p, k: (g, 0, p * k)),
            scratch_shapes=scratch_shapes,
        ),
        compiler_params=pltpu.CompilerParams(
            dimension_semantics=("parallel", "arbitrary", "arbitrary"),
            vmem_limit_bytes=vmem_limit,
        ),
    )(gamma, x_flat)

    return out_flat[:, :C, :N].reshape(B, C, H, W)


def _reference(x, gamma):
    """Pure-JAX reference mirroring the PyTorch forward."""
    B, C, H, W = x.shape
    xf = x.reshape(B, C, H * W).astype(jnp.float32)
    energy = jnp.einsum("bcn,bdn->bcd", xf, xf)
    energy_new = jnp.max(energy, axis=-1, keepdims=True) - energy
    attention = jax.nn.softmax(energy_new, axis=-1)
    out = jnp.einsum("bcd,bdn->bcn", attention, xf).reshape(B, C, H, W)
    return (jnp.float32(gamma[0]) * out + x.astype(jnp.float32)).astype(x.dtype)


if __name__ == "__main__":
    key = jax.random.PRNGKey(0)
    B, C, H, W = 2, 4, 16, 16
    x = jax.random.normal(key, (B, C, H, W), dtype=jnp.float32)

    # Parameter init as in the PyTorch module: gamma = zeros(1).
    # Also test a nonzero gamma to actually exercise the attention path.
    gamma_zero = jnp.zeros((1,), dtype=jnp.float32)
    gamma_test = jnp.array([0.5], dtype=jnp.float32)

    out0 = jax.block_until_ready(cam_module(x, gamma_zero))
    out1 = jax.block_until_ready(cam_module(x, gamma_test))

    ref0 = _reference(x, gamma_zero)
    ref1 = _reference(x, gamma_test)

    assert out0.shape == x.shape and out1.shape == x.shape
    # Tolerance accounts for the approx (EUP) reciprocal in the softmax denom.
    assert jnp.allclose(out0, ref0, atol=5e-3, rtol=5e-3), float(
        jnp.max(jnp.abs(out0 - ref0)))
    assert jnp.allclose(out1, ref1, atol=5e-3, rtol=5e-3), float(
        jnp.max(jnp.abs(out1 - ref1)))

    # Force the chunked (kn > 1) path with a tiny tile budget to exercise the
    # energy accumulation / revisit-safe output spec.
    out_chunked = jax.block_until_ready(
        cam_module(x, gamma_test, tile_budget_bytes=20_000))
    assert jnp.allclose(out_chunked, ref1, atol=5e-3, rtol=5e-3), float(
        jnp.max(jnp.abs(out_chunked - ref1)))

    # Sublane-aligned C with N < 128 (single-pass, no padding at all).
    x2 = jax.random.normal(jax.random.PRNGKey(1), (2, 8, 8, 8), dtype=jnp.float32)
    out2 = jax.block_until_ready(cam_module(x2, gamma_test))
    ref2 = _reference(x2, gamma_test)
    assert jnp.allclose(out2, ref2, atol=5e-3, rtol=5e-3), float(
        jnp.max(jnp.abs(out2 - ref2)))

    # bf16 path: operands stay bf16 on the MXU, energy/softmax stay f32.
    x_bf = x.astype(jnp.bfloat16)
    out_bf = jax.block_until_ready(cam_module(x_bf, gamma_test))
    ref_bf = _reference(x_bf, gamma_test)
    assert jnp.allclose(out_bf.astype(jnp.float32), ref_bf.astype(jnp.float32),
                        atol=5e-2, rtol=5e-2)

    print("KERNEL_OK")
</pallas_src>

<mosaic_0001>
module attributes {stable_mosaic.version = 11 : i64} {
  func.func @kernel(%arg0: i32, %arg1: i32, %arg2: i32, %arg3: memref<1xf32, #tpu.memory_space<smem>>, %arg4: memref<1x8x256xf32, #tpu.memory_space<vmem>>, %arg5: memref<1x8x256xf32, #tpu.memory_space<vmem>>, %arg6: memref<1x8x8xf32, #tpu.memory_space<vmem>>, %arg7: memref<1x8x8xf32, #tpu.memory_space<vmem>>) attributes {dimension_semantics = [#tpu.dimension_semantics<parallel>, #tpu.dimension_semantics<arbitrary>, #tpu.dimension_semantics<arbitrary>], iteration_bounds = array<i64: 2, 2, 1>, scalar_prefetch = 0 : i64, scratch_operands = 2 : i64, tpu.core_type = #tpu.core_type<tc>, window_params = [{transform_indices = @transform_0, window_bounds = array<i64: 1>}, {transform_indices = @transform_1, window_bounds = array<i64: 1, 8, 256>}, {transform_indices = @transform_2, window_bounds = array<i64: 1, 8, 256>}]} {
    %c0_i32 = arith.constant 0 : i32
    %0 = arith.cmpi eq, %arg1, %c0_i32 : i32
    %1 = arith.extui %0 : i1 to i32
    %c0_i32_0 = arith.constant 0 : i32
    %2 = arith.cmpi ne, %1, %c0_i32_0 : i32
    scf.if %2 {
      %c0_i32_2 = arith.constant 0 : i32
      %6 = arith.cmpi eq, %arg2, %c0_i32_2 : i32
      %7 = arith.extui %6 : i1 to i32
      %c0_i32_3 = arith.constant 0 : i32
      %8 = arith.cmpi ne, %7, %c0_i32_3 : i32
      scf.if %8 {
        %cst_12 = arith.constant 0.000000e+00 : f32
        %14 = vector.broadcast %cst_12 : f32 to vector<1x8x8xf32>
        %c0_13 = arith.constant 0 : index
        %c0_14 = arith.constant 0 : index
        %c0_15 = arith.constant 0 : index
        %15 = vector.load %arg6[%c0_13, %c0_14, %c0_15] : memref<1x8x8xf32, #tpu.memory_space<vmem>>, vector<1x8x8xf32>
        tpu.vector_store %arg6[%c0_13, %c0_14, %c0_15], %14 {strides = array<i32>} : memref<1x8x8xf32, #tpu.memory_space<vmem>>, vector<1x8x8xf32>,
      } else {
      }
      %c0 = arith.constant 0 : index
      %c0_4 = arith.constant 0 : index
      %c0_5 = arith.constant 0 : index
      %9 = vector.load %arg4[%c0, %c0_4, %c0_5] : memref<1x8x256xf32, #tpu.memory_space<vmem>>, vector<1x8x256xf32>
      %c0_6 = arith.constant 0 : index
      %c0_7 = arith.constant 0 : index
      %c0_8 = arith.constant 0 : index
      %10 = vector.load %arg6[%c0_6, %c0_7, %c0_8] : memref<1x8x8xf32, #tpu.memory_space<vmem>>, vector<1x8x8xf32>
      "tpu.trace_start"() <{level = 10 : i32, message = "bcn,bdn->bcd"}> : () -> ()
      %cst = arith.constant dense<0.000000e+00> : vector<1x8x8xf32>
      %11 = tpu.matmul %9, %9, %cst {dimension_numbers = #tpu.dot_dimension_numbers<[2], [2], [1], [1], [0, 0, 0, 1, 1, 1], [0], [0]>} : vector<1x8x256xf32>, vector<1x8x256xf32>, vector<1x8x8xf32> -> vector<1x8x8xf32>
      "tpu.trace_stop"() : () -> ()
      %12 = arith.addf %10, %11 : vector<1x8x8xf32>
      %c0_9 = arith.constant 0 : index
      %c0_10 = arith.constant 0 : index
      %c0_11 = arith.constant 0 : index
      %13 = vector.load %arg6[%c0_9, %c0_10, %c0_11] : memref<1x8x8xf32, #tpu.memory_space<vmem>>, vector<1x8x8xf32>
      tpu.vector_store %arg6[%c0_9, %c0_10, %c0_11], %12 {strides = array<i32>} : memref<1x8x8xf32, #tpu.memory_space<vmem>>, vector<1x8x8xf32>,
    } else {
    }
    %c1_i32 = arith.constant 1 : i32
    %3 = arith.cmpi eq, %arg1, %c1_i32 : i32
    %4 = arith.extui %3 : i1 to i32
    %c0_i32_1 = arith.constant 0 : i32
    %5 = arith.cmpi ne, %4, %c0_i32_1 : i32
    scf.if %5 {
      %c0_i32_2 = arith.constant 0 : i32
      %6 = arith.cmpi eq, %arg2, %c0_i32_2 : i32
      %7 = arith.extui %6 : i1 to i32
      %c0_i32_3 = arith.constant 0 : i32
      %8 = arith.cmpi ne, %7, %c0_i32_3 : i32
      scf.if %8 {
        %c0_13 = arith.constant 0 : index
        %c0_14 = arith.constant 0 : index
        %c0_15 = arith.constant 0 : index
        %17 = vector.load %arg6[%c0_13, %c0_14, %c0_15] : memref<1x8x8xf32, #tpu.memory_space<vmem>>, vector<1x8x8xf32>
        %18 = tpu.iota {dimensions = array<i32: 2>} : vector<1x8x8xi32>
        %c4_i32 = arith.constant 4 : i32
        %19 = vector.broadcast %c4_i32 : i32 to vector<1x8x8xi32>
        %20 = arith.cmpi slt, %18, %19 : vector<1x8x8xi32>
        %cst_16 = arith.constant 0x7F800000 : f32
        %21 = vector.broadcast %cst_16 : f32 to vector<1x8x8xf32>
        %22 = arith.select %20, %17, %21 : vector<1x8x8xi1>, vector<1x8x8xf32>
        %cst_17 = arith.constant dense<0x7F800000> : vector<1x8xf32>
        %23 = vector.multi_reduction <minimumf>, %22, %cst_17 [2] : vector<1x8x8xf32> to vector<1x8xf32>
        %24 = vector.shape_cast %23 : vector<1x8xf32> to vector<1x8x1xf32>
        %25 = vector.broadcast %24 : vector<1x8x1xf32> to vector<1x8x8xf32>
        %26 = arith.subf %25, %17 : vector<1x8x8xf32>
        %cst_18 = arith.constant 0xFF800000 : f32
        %27 = vector.broadcast %cst_18 : f32 to vector<1x8x8xf32>
        %28 = arith.select %20, %26, %27 : vector<1x8x8xi1>, vector<1x8x8xf32>
        %cst_19 = arith.constant 0.000000e+00 : f32
        %29 = vector.broadcast %cst_19 : f32 to vector<1x8x8xf32>
        %30 = arith.minimumf %28, %29 : vector<1x8x8xf32>
        %31 = math.exp %30 : vector<1x8x8xf32>
        %cst_20 = arith.constant dense<0.000000e+00> : vector<1x8xf32>
        %32 = vector.multi_reduction <add>, %31, %cst_20 [2] : vector<1x8x8xf32> to vector<1x8xf32>
        %33 = vector.shape_cast %32 : vector<1x8xf32> to vector<1x8x1xf32>
        %34 = tpu.reciprocal %33 {approx = true} : vector<1x8x1xf32> -> vector<1x8x1xf32>
        %35 = vector.broadcast %34 : vector<1x8x1xf32> to vector<1x8x8xf32>
        %36 = arith.mulf %31, %35 : vector<1x8x8xf32>
        %c0_21 = arith.constant 0 : index
        %c0_22 = arith.constant 0 : index
        %c0_23 = arith.constant 0 : index
        %37 = vector.load %arg7[%c0_21, %c0_22, %c0_23] : memref<1x8x8xf32, #tpu.memory_space<vmem>>, vector<1x8x8xf32>
        tpu.vector_store %arg7[%c0_21, %c0_22, %c0_23], %36 {strides = array<i32>} : memref<1x8x8xf32, #tpu.memory_space<vmem>>, vector<1x8x8xf32>,
      } else {
      }
      %c0 = arith.constant 0 : index
      %c0_4 = arith.constant 0 : index
      %c0_5 = arith.constant 0 : index
      %9 = vector.load %arg4[%c0, %c0_4, %c0_5] : memref<1x8x256xf32, #tpu.memory_space<vmem>>, vector<1x8x256xf32>
      %c0_6 = arith.constant 0 : index
      %c0_7 = arith.constant 0 : index
      %c0_8 = arith.constant 0 : index
      %10 = vector.load %arg7[%c0_6, %c0_7, %c0_8] : memref<1x8x8xf32, #tpu.memory_space<vmem>>, vector<1x8x8xf32>
      "tpu.trace_start"() <{level = 10 : i32, message = "bcd,bdn->bcn"}> : () -> ()
      %cst = arith.constant dense<0.000000e+00> : vector<1x8x256xf32>
      %11 = tpu.matmul %10, %9, %cst {dimension_numbers = #tpu.dot_dimension_numbers<[2], [1], [1], [2], [0, 0, 0, 1, 1, 2], [0], [0]>} : vector<1x8x8xf32>, vector<1x8x256xf32>, vector<1x8x256xf32> -> vector<1x8x256xf32>
      "tpu.trace_stop"() : () -> ()
      %c0_9 = arith.constant 0 : index
      %12 = memref.load %arg3[%c0_9] : memref<1xf32, #tpu.memory_space<smem>>
      %13 = vector.broadcast %12 : f32 to vector<1x8x256xf32>
      %14 = arith.mulf %13, %11 : vector<1x8x256xf32>
      %15 = arith.addf %14, %9 : vector<1x8x256xf32>
      %c0_10 = arith.constant 0 : index
      %c0_11 = arith.constant 0 : index
      %c0_12 = arith.constant 0 : index
      %16 = vector.load %arg5[%c0_10, %c0_11, %c0_12] : memref<1x8x256xf32, #tpu.memory_space<vmem>>, vector<1x8x256xf32>
      tpu.vector_store %arg5[%c0_10, %c0_11, %c0_12], %15 {strides = array<i32>} : memref<1x8x256xf32, #tpu.memory_space<vmem>>, vector<1x8x256xf32>,
    } else {
    }
    return
  }
  func.func @transform_0(%arg0: i32, %arg1: i32, %arg2: i32) -> i32 {
    %c0_i32 = arith.constant 0 : i32
    %c0_i32_0 = arith.constant 0 : i32
    return %c0_i32 : i32
  }
  func.func @transform_1(%arg0: i32, %arg1: i32, %arg2: i32) -> (i32, i32, i32) {
    %c0_i32 = arith.constant 0 : i32
    %c0_i32_0 = arith.constant 0 : i32
    return %arg0, %c0_i32, %arg2 : i32, i32, i32
  }
  func.func @transform_2(%arg0: i32, %arg1: i32, %arg2: i32) -> (i32, i32, i32) {
    %0 = arith.muli %arg1, %arg2 : i32
    %c0_i32 = arith.constant 0 : i32
    %c0_i32_0 = arith.constant 0 : i32
    return %arg0, %c0_i32, %0 : i32, i32, i32
  }
}

</mosaic_0001>

<llo_original>
// kernel: tpu_custom_call.1
$region0: #{tpu_custom_call.1}
  #allocation0 [shape = 'u32[]', space=smem, size = 0x4, offset = 0x4, fixed_abs, tag = 'smem constant byte address 0x4 - core index']
  #allocation1 [shape = 'u32[72,128]{1,0:T(1,128)}', space=vmem, size = 0x9000, scoped, tag = 'internal scratch']
  #allocation2 [shape = 'f32[1,8,8]{2,1,0:T(8,128)}', space=vmem, size = 0x1000, scoped, tag = 'scratch operand']
  #allocation3 [shape = 'f32[1,8,8]{2,1,0:T(8,128)}', space=vmem, size = 0x1000, scoped, tag = 'scratch operand']
  #allocation4 [shape = 'f32[1]{0:T(128)S(6)}', space=smem, size = 0x200, scoped, tag = 'scoped memory for tpu_custom_call.1']
  %s0 = inlined_call_operand.<no memory space> [shape: f32[1], index: 0, kind: input, shape index: {}]
  %s1 = inlined_call_operand.hbm [shape: f32[2,8,256], index: 1, kind: input, shape index: {}]
  %s2 = inlined_call_operand.hbm [shape: f32[2,8,256], index: 2, kind: output, shape index: {}]
  %s3 = sld [smem:[#allocation0]]
  $region61: #{tpu_custom_call.1} parent=0
    _
  %s5 = ssub.s32 1, %s3
  %s6 = scalar_select 0, %s5, %s3
  %7 = sst [smem:[#allocation4]] %s0
  $region1: #{tpu_custom_call.1} parent=0
    #allocation5 [shape = 'u8[16384]{0}', space=vmem, size = 0x4000, scoped, tag = 'input window, operand 1']
    #allocation6 [shape = 's32[2]{0}', space=sflag, size = 0x8, scoped, tag = 'scoped memory for tpu_custom_call.1']
    #allocation7 [shape = 's32[2]{0}', space=sflag, size = 0x8, scoped, tag = 'scoped memory for tpu_custom_call.1']
    #allocation8 [shape = 'u8[16384]{0}', space=vmem, size = 0x4000, scoped, tag = 'output window, operand 0']
    %8 = vsyncpa [#allocation6], 0
    %s9 = scalar_lea.sflag [#allocation6], 1
    %10 = vsyncpa %s9, 0
    %11 = vsyncpa [#allocation7], 0
    %s12 = scalar_lea.sflag [#allocation7], 1
    %13 = vsyncpa %s12, 0
    loop: start=0, step=1, limit=6
    $region2: #{tpu_custom_call.1} parent=1 // loop_pre_header
      _
    $region3: #{tpu_custom_call.1} parent=1 // loop_header
      %s15 = sphi 0, %s19
      %p16 = scmp.ge.s32.totalorder %s15, 6
      %s22 = sphi 0, %s41
      %s23 = sphi 0, %s37
      %s24 = sphi 0, %s33
      %s25 = sphi 0, %s22
      %s26 = sphi 0, %s23
      %s27 = sphi 0, %s24
      %s28 = sphi 0, %s25
      %s29 = sphi 0, %s26
      %s30 = sphi 0, %s27
      %s42 = sphi 0, %s42
      %s44 = sphi 0, %s42
      %s45 = sphi 0, %s44
      %s59 = sphi 0, %s45
      %s67 = sphi 0, %s69
      %s70 = sphi 0, %s67
      %s71 = sphi 0, %s70
      %s87 = sphi 0, %s71
      %s97 = sphi 0, %s99
      %s100 = sphi 0, %s97
      %s101 = sphi 0, %s100
      %s117 = sphi 0, %s101
    $region4: #{tpu_custom_call.1} parent=1 // loop_header_branch
      %18 = sbr.rel (%p16) target = $region8
    $region5: #{tpu_custom_call.1} parent=1 // loop_body
      %s20 = ssub.s32 %s15, 1
      %s21 = ssub.s32 %s15, 2
      %s31 = sadd.s32 1, %s24
      %p32 = scmp.ge.s32.totalorder %s31, 1
      %s33 = scalar_select %p32, 0, %s31
      %s34 = sadd.s32 1, %s23
      %s35 = scalar_select %p32, %s34, %s23
      %p36 = scmp.ge.s32.totalorder %s35, 2
      %s37 = scalar_select %p36, 0, %s35
      %s38 = sadd.s32 1, %s22
      %s39 = scalar_select %p36, %s38, %s22
      %p40 = scmp.ge.s32.totalorder %s39, 2
      %s41 = scalar_select %p40, 0, %s39
      %s43 = sadd.s32 %s42, 1
      %p46 = scmp.eq.s32.totalorder %s15, 3
      %p47 = scmp.ne.s32.totalorder %s42, %s44
      %p48 = scmp.eq.s32.totalorder %s15, 0
      %p49 = por %p47, %p48
      %p50 = scmp.ne.s32.totalorder %s42, %s44
      %p51 = scmp.eq.s32.totalorder %s20, 3
      %p52 = por %p50, %p51
      %p53 = scmp.ne.s32.totalorder %s44, %s45
      %p54 = scmp.eq.s32.totalorder %s20, 0
      %p55 = por %p53, %p54
      %p56 = scmp.ne.s32.totalorder %s44, %s45
      %p57 = scmp.eq.s32.totalorder %s21, 3
      %p58 = por %p56, %p57
      %p60 = scmp.ne.s32.totalorder %s45, %s59
      %p61 = scmp.eq.s32.totalorder %s21, 0
      %p62 = por %p60, %p61
      %s63 = ssub.s32 %s22, %s41
      %s64 = ssub.s32 %s24, %s33
      %s65 = sor.u32 %s63, %s64
      %p66 = scmp.eq.s32.totalorder %s65, 0
      %s68 = sadd.s32 %s67, 1
      %s69 = scalar_select %p66, %s67, %s68
      %p72 = pneg %p66
      %p73 = scmp.eq.s32.totalorder %s15, 3
      %p74 = por %p72, %p73
      %p75 = scmp.ne.s32.totalorder %s67, %s70
      %p76 = scmp.eq.s32.totalorder %s15, 0
      %p77 = por %p75, %p76
      %p78 = scmp.ne.s32.totalorder %s67, %s70
      %p79 = scmp.eq.s32.totalorder %s20, 3
      %p80 = por %p78, %p79
      %p81 = scmp.ne.s32.totalorder %s70, %s71
      %p82 = scmp.eq.s32.totalorder %s20, 0
      %p83 = por %p81, %p82
      %p84 = scmp.ne.s32.totalorder %s70, %s71
      %p85 = scmp.eq.s32.totalorder %s21, 3
      %p86 = por %p84, %p85
      %p88 = scmp.ne.s32.totalorder %s71, %s87
      %p89 = scmp.eq.s32.totalorder %s21, 0
      %p90 = por %p88, %p89
      %s91 = smul.u32 %s23, %s24
      %s92 = smul.u32 %s37, %s33
      %s93 = ssub.s32 %s22, %s41
      %s94 = ssub.s32 %s91, %s92
      %s95 = sor.u32 %s93, %s94
      %p96 = scmp.eq.s32.totalorder %s95, 0
      %s98 = sadd.s32 %s97, 1
      %s99 = scalar_select %p96, %s97, %s98
      %p102 = pneg %p96
      %p103 = scmp.eq.s32.totalorder %s15, 3
      %p104 = por %p102, %p103
      %p105 = scmp.ne.s32.totalorder %s97, %s100
      %p106 = scmp.eq.s32.totalorder %s15, 0
      %p107 = por %p105, %p106
      %p108 = scmp.ne.s32.totalorder %s97, %s100
      %p109 = scmp.eq.s32.totalorder %s20, 3
      %p110 = por %p108, %p109
      %p111 = scmp.ne.s32.totalorder %s100, %s101
      %p112 = scmp.eq.s32.totalorder %s20, 0
      %p113 = por %p111, %p112
      %p114 = scmp.ne.s32.totalorder %s100, %s101
      %p115 = scmp.eq.s32.totalorder %s21, 3
      %p116 = por %p114, %p115
      %p118 = scmp.ne.s32.totalorder %s101, %s117
      %p119 = scmp.eq.s32.totalorder %s21, 0
      %p120 = por %p118, %p119
      %p121 = scmp.le.s32.totalorder 1, %s15
      %p122 = scmp.lt.s32.totalorder %s15, 5
      %p123 = pnand %p121, %p122
      %p124 = pneg %p123
      // Predicated region
      $region9: #{tpu_custom_call.1} parent=5 // pred_check
        _
      $region10: #{tpu_custom_call.1} parent=5 // pred_check_branch
        %126 = sbr.rel (%p123) target = $region12
      $region11: #{tpu_custom_call.1} parent=5 // pred_region
        %s127 = ssub.s32 %s15, 1
        // Predicated region
        $region13: #{tpu_custom_call.1} parent=11 // pred_check
          %p128 = pneg %p55
        $region14: #{tpu_custom_call.1} parent=11 // pred_check_branch
          %130 = sbr.rel (%p128) target = $region16
        $region15: #{tpu_custom_call.1} parent=11 // pred_region
          _
        $region16: #{tpu_custom_call.1} parent=11 // pred_fallthru
          _
      $region12: #{tpu_custom_call.1} parent=5 // pred_fallthru
        _
      %p131 = scmp.lt.s32.totalorder %s15, 4
      // Predicated region
      $region17: #{tpu_custom_call.1} parent=5 // pred_check
        %p132 = pneg %p131
      $region18: #{tpu_custom_call.1} parent=5 // pred_check_branch
        %134 = sbr.rel (%p132) target = $region20
      $region19: #{tpu_custom_call.1} parent=5 // pred_region
        // Predicated region
        $region21: #{tpu_custom_call.1} parent=19 // pred_check
          %p135 = pneg %p77
        $region22: #{tpu_custom_call.1} parent=19 // pred_check_branch
          %137 = sbr.rel (%p135) target = $region24
        $region23: #{tpu_custom_call.1} parent=19 // pred_region
          %s138 = sand.u32 %s67, 1
          %s139 = scalar_lea.sflag [#allocation6], %s138
          %s140 = sand.u32 %s67, 1
          %s141 = smul.addr %s140, 16
          %s142 = scalar_lea.vmem [#allocation5], %s141
          %s143 = smul.u32 2, %s24
          %145 = vsyncadd %s139, 0
          %s146 = smul.addr %s22, 2
          %s147 = sadd.s32 %s143, %s146
          %s148 = smul.addr %s147, 8
          %s149 = scalar_lea.hbm %s1, %s148
          %s151 = sshll.u32 %s149, 4
          %s152 = int_to_ptr.hbm [resolvable:$true] %s151
          %s153 = sshll.u32 %s142, 4
          %s154 = int_to_ptr.vmem [resolvable:$true] %s153
          %156 = dma.hbm_to_vmem [thread:$0]  %s152, 256, %s154, %s139
        $region24: #{tpu_custom_call.1} parent=19 // pred_fallthru
          _
      $region20: #{tpu_custom_call.1} parent=5 // pred_fallthru
        _
      %p157 = scmp.le.s32.totalorder 1, %s15
      %p158 = scmp.lt.s32.totalorder %s15, 5
      %p159 = pnand %p157, %p158
      %p160 = pneg %p159
      // Predicated region
      $region25: #{tpu_custom_call.1} parent=5 // pred_check
        _
      $region26: #{tpu_custom_call.1} parent=5 // pred_check_branch
        %162 = sbr.rel (%p159) target = $region28
      $region27: #{tpu_custom_call.1} parent=5 // pred_region
        %s163 = ssub.s32 %s15, 1
        %s164 = sand.u32 %s70, 1
        %s165 = scalar_lea.sflag [#allocation6], %s164
        %s166 = sand.u32 %s70, 1
        %s167 = smul.addr %s166, 16
        %s168 = scalar_lea.vmem [#allocation5], %s167
        // Predicated region
        $region29: #{tpu_custom_call.1} parent=27 // pred_check
          %p169 = pneg %p83
        $region30: #{tpu_custom_call.1} parent=27 // pred_check_branch
          %171 = sbr.rel (%p169) target = $region32
        $region31: #{tpu_custom_call.1} parent=27 // pred_region
          %173 = dma.done %s165, 256
        $region32: #{tpu_custom_call.1} parent=27 // pred_fallthru
          _
        %p174 = pneg %p55
        %p175 = pneg %p52
        %s176 = sand.u32 %s70, 1
        %s177 = scalar_lea.sflag [#allocation6], %s176
        %s178 = sand.u32 %s70, 1
        %s179 = smul.addr %s178, 16
        %s180 = scalar_lea.vmem [#allocation5], %s179
        %p181 = pneg %p83
        %p182 = pneg %p80
        %p183 = pneg %p113
        %p184 = pneg %p110
        %s185 = sand.u32 %s100, 1
        %s186 = scalar_lea.sflag [#allocation7], %s185
        %s187 = sand.u32 %s100, 1
        %s188 = smul.addr %s187, 16
        %s189 = scalar_lea.vmem [#allocation8], %s188
        %s190 = smul.u32 2, %s27
        %s191 = smul.u32 %s26, %s27
        %s192 = smul.u32 2, %s191
        %p193 = scmp.eq.s32.totalorder %s26, 0
        // Predicated region
        $region33: #{tpu_custom_call.1} parent=27 // pred_check
          %p194 = pneg %p193
        $region34: #{tpu_custom_call.1} parent=27 // pred_check_branch
          %196 = sbr.rel (%p194) target = $region36
        $region35: #{tpu_custom_call.1} parent=27 // pred_region
          %p197 = scmp.eq.s32.totalorder %s27, 0
          // Predicated region
          $region37: #{tpu_custom_call.1} parent=35 // pred_check
            %p198 = pneg %p197
          $region38: #{tpu_custom_call.1} parent=35 // pred_check_branch
            %200 = sbr.rel (%p198) target = $region40
          $region39: #{tpu_custom_call.1} parent=35 // pred_region
            %vm201 = vcmask 64512
            %202 = vst.msk [vmem:[#allocation2] sm:$0xff] %vm201, 0.0
          $region40: #{tpu_custom_call.1} parent=35 // pred_fallthru
            _
          %v203 = vld [vmem:[%s168] sm:$0xff]
          %v204 = vld [vmem:[%s168 + $0x8] sm:$0xff]
          %v205 = vld [vmem:[#allocation2] sm:$0xff]
          %206 = vmatpush.xpose.msra.mxu0 0.0
          %207 = vmatpush.xpose.msra.mxu0 0.0
          %208 = vmatpush.xpose.msra.mxu0 0.0
          %209 = vmatpush.xpose.msra.mxu0 0.0
          %210 = vmatpush.xpose.msra.mxu0 0.0
          %211 = vmatpush.xpose.msra.mxu0 0.0
          %212 = vmatpush.xpose.msra.mxu0 0.0
          %213 = vmatpush.xpose.msra.mxu0 0.0
          %214 = vmatpush.xpose.msra.mxu0 0.0
          %215 = vmatpush.xpose.msra.mxu0 0.0
          %216 = vmatpush.xpose.msra.mxu0 0.0
          %217 = vmatpush.xpose.msra.mxu0 0.0
          %218 = vmatpush.xpose.msra.mxu0 0.0
          %219 = vmatpush.xpose.msra.mxu0 0.0
          %220 = vmatpush.xpose.msra.mxu0 0.0
          %221 = vmatpush.xpose.msra.mxu0 %v203
          %222 = vmatmul.f32.gmra.mxu0 %v203
          %v223 = vpop.f32.mrf.mxu0
          %v224 = vadd.f32 0.0, %v223
          %225 = vdwg.mxu0
          %226 = vmatpush.xpose.msra.mxu0 0.0
          %227 = vmatpush.xpose.msra.mxu0 0.0
          %228 = vmatpush.xpose.msra.mxu0 0.0
          %229 = vmatpush.xpose.msra.mxu0 0.0
          %230 = vmatpush.xpose.msra.mxu0 0.0
          %231 = vmatpush.xpose.msra.mxu0 0.0
          %232 = vmatpush.xpose.msra.mxu0 0.0
          %233 = vmatpush.xpose.msra.mxu0 0.0
          %234 = vmatpush.xpose.msra.mxu0 0.0
          %235 = vmatpush.xpose.msra.mxu0 0.0
          %236 = vmatpush.xpose.msra.mxu0 0.0
          %237 = vmatpush.xpose.msra.mxu0 0.0
          %238 = vmatpush.xpose.msra.mxu0 0.0
          %239 = vmatpush.xpose.msra.mxu0 0.0
          %240 = vmatpush.xpose.msra.mxu0 0.0
          %241 = vmatpush.xpose.msra.mxu0 %v204
          %242 = vmatmul.f32.gmra.mxu0 %v204
          %v243 = vpop.f32.mrf.mxu0
          %v244 = vadd.f32 %v224, %v243
          %245 = vdwg.mxu0
          %v246 = vadd.f32 %v205, %v244
          %vm247 = vcmask 64512
          %248 = vst.msk [vmem:[#allocation2] sm:$0xff] %vm247, %v246
        $region36: #{tpu_custom_call.1} parent=27 // pred_fallthru
          _
        %p249 = scmp.eq.s32.totalorder %s26, 1
        // Predicated region
        $region41: #{tpu_custom_call.1} parent=27 // pred_check
          %p250 = pneg %p249
        $region42: #{tpu_custom_call.1} parent=27 // pred_check_branch
          %252 = sbr.rel (%p250) target = $region44
        $region43: #{tpu_custom_call.1} parent=27 // pred_region
          %p253 = scmp.eq.s32.totalorder %s27, 0
          // Predicated region
          $region45: #{tpu_custom_call.1} parent=43 // pred_check
            %p254 = pneg %p253
          $region46: #{tpu_custom_call.1} parent=43 // pred_check_branch
            %256 = sbr.rel (%p254) target = $region48
          $region47: #{tpu_custom_call.1} parent=43 // pred_region
            %v257 = vld [vmem:[#allocation2] sm:$0xff]
            %v258 = vlaneseq
            %v259 = vand.u32 %v258, 127
            %vm260 = vcmp.lt.s32.totalorder %v259, 4
            %v261 = vsel %vm260, %v257, inf
            %vm262 = vcmask 64512
            %v263 = vsel %vm262, %v261, inf
            %264 = vmin.xlane.f32.xlu0 %v263
            %v265 = vpop.xlane.xlu0 %264
            %v266 = vsub.f32 %v265, %v257
            %v267 = vsel %vm260, %v266, -inf
            %v268 = vmin.f32 %v267, 0.0
            %v269 = vmul.f32 %v268, 1.442695
            %v270 = vpow.pop %v269
            %v271 = vsel %vm262, %v270, 0.0
            %272 = vadd.xlane.f32.xlu0 %v271
            %v273 = vpop.xlane.xlu0 %272
            %v274 = vrcp.pop %v273
            %v275 = vmul.f32 %v270, %v274
            %276 = vst.msk [vmem:[#allocation3] sm:$0xff] %vm262, %v275
          $region48: #{tpu_custom_call.1} parent=43 // pred_fallthru
            _
          %v277 = vld [vmem:[%s168] sm:$0xff]
          %v278 = vld [vmem:[%s168 + $0x8] sm:$0xff]
          %v279 = vld [vmem:[#allocation3] sm:$0xff]
          %vm280 = vcmask 64512
          %v282 = vsel %vm280, %v279, 0
          %284 = vmatpush.msra.mxu0 0.0
          %285 = vmatpush.msra.mxu0 0.0
          %286 = vmatpush.msra.mxu0 0.0
          %287 = vmatpush.msra.mxu0 0.0
          %288 = vmatpush.msra.mxu0 0.0
          %289 = vmatpush.msra.mxu0 0.0
          %290 = vmatpush.msra.mxu0 0.0
          %291 = vmatpush.msra.mxu0 0.0
          %292 = vmatpush.msra.mxu0 0.0
          %293 = vmatpush.msra.mxu0 0.0
          %294 = vmatpush.msra.mxu0 0.0
          %295 = vmatpush.msra.mxu0 0.0
          %296 = vmatpush.msra.mxu0 0.0
          %297 = vmatpush.msra.mxu0 0.0
          %298 = vmatpush.msra.mxu0 0.0
          %299 = vmatpush.msra.mxu0 %v277
          %300 = vmatmul.f32.gmra.mxu0 %v282
          %v301 = vpop.f32.mrf.mxu0
          %v302 = vadd.f32 0.0, %v301
          %303 = vdwg.mxu0
          %304 = vmatpush.msra.mxu0 0.0
          %305 = vmatpush.msra.mxu0 0.0
          %306 = vmatpush.msra.mxu0 0.0
          %307 = vmatpush.msra.mxu0 0.0
          %308 = vmatpush.msra.mxu0 0.0
          %309 = vmatpush.msra.mxu0 0.0
          %310 = vmatpush.msra.mxu0 0.0
          %311 = vmatpush.msra.mxu0 0.0
          %312 = vmatpush.msra.mxu0 0.0
          %313 = vmatpush.msra.mxu0 0.0
          %314 = vmatpush.msra.mxu0 0.0
          %315 = vmatpush.msra.mxu0 0.0
          %316 = vmatpush.msra.mxu0 0.0
          %317 = vmatpush.msra.mxu0 0.0
          %318 = vmatpush.msra.mxu0 0.0
          %319 = vmatpush.msra.mxu0 %v278
          %320 = vmatmul.f32.gmra.mxu0 %v282
          %v321 = vpop.f32.mrf.mxu0
          %v322 = vadd.f32 0.0, %v321
          %323 = vdwg.mxu0
          %s324 = sld [smem:[#allocation4]]
          %v325 = vstv %s324
          %v326 = vmul.f32 %v325, %v302
          %v327 = vmul.f32 %v325, %v322
          %v328 = vadd.f32 %v326, %v277
          %v329 = vadd.f32 %v327, %v278
          %330 = vst [vmem:[%s189] sm:$0xff] %v328
          %331 = vst [vmem:[%s189 + $0x8] sm:$0xff] %v329
        $region44: #{tpu_custom_call.1} parent=27 // pred_fallthru
          _
        %s332 = sand.u32 %s100, 1
        %s333 = scalar_lea.sflag [#allocation7], %s332
        %s334 = sand.u32 %s100, 1
        %s335 = smul.addr %s334, 16
        %s336 = scalar_lea.vmem [#allocation8], %s335
        // Predicated region
        $region49: #{tpu_custom_call.1} parent=27 // pred_check
          %p337 = pneg %p110
        $region50: #{tpu_custom_call.1} parent=27 // pred_check_branch
          %339 = sbr.rel (%p337) target = $region52
        $region51: #{tpu_custom_call.1} parent=27 // pred_region
          %s340 = smul.u32 %s26, %s27
          %s341 = smul.u32 2, %s340
          %343 = vsyncadd %s333, 0
          %s344 = smul.addr %s25, 2
          %s345 = sadd.s32 %s341, %s344
          %s346 = smul.addr %s345, 8
          %s347 = scalar_lea.hbm %s2, %s346
          %s349 = sshll.u32 %s336, 4
          %s350 = int_to_ptr.vmem [resolvable:$true] %s349
          %s351 = sshll.u32 %s347, 4
          %s352 = int_to_ptr.hbm [resolvable:$true] %s351
          %354 = dma.vmem_to_hbm [thread:$0]  %s350, 256, %s352, %s333
        $region52: #{tpu_custom_call.1} parent=27 // pred_fallthru
          _
      $region28: #{tpu_custom_call.1} parent=5 // pred_fallthru
        _
      %p355 = scmp.le.s32.totalorder 2, %s15
      // Predicated region
      $region53: #{tpu_custom_call.1} parent=5 // pred_check
        %p356 = pneg %p355
      $region54: #{tpu_custom_call.1} parent=5 // pred_check_branch
        %358 = sbr.rel (%p356) target = $region56
      $region55: #{tpu_custom_call.1} parent=5 // pred_region
        %s359 = ssub.s32 %s15, 2
        // Predicated region
        $region57: #{tpu_custom_call.1} parent=55 // pred_check
          %p360 = pneg %p116
        $region58: #{tpu_custom_call.1} parent=55 // pred_check_branch
          %362 = sbr.rel (%p360) target = $region60
        $region59: #{tpu_custom_call.1} parent=55 // pred_region
          %s363 = sand.u32 %s101, 1
          %s364 = scalar_lea.sflag [#allocation7], %s363
          %s365 = sand.u32 %s101, 1
          %s366 = smul.addr %s365, 16
          %s367 = scalar_lea.vmem [#allocation8], %s366
          %369 = dma.done %s364, 256
        $region60: #{tpu_custom_call.1} parent=55 // pred_fallthru
          _
      $region56: #{tpu_custom_call.1} parent=5 // pred_fallthru
        _
    $region6: #{tpu_custom_call.1} parent=1 // loop_footer
      %s19 = sadd.s32 1, %s15
    $region7: #{tpu_custom_call.1} parent=1 // loop_footer_branch
      %14 = sbr.rel target = $region3
    $region8: #{tpu_custom_call.1} parent=1 // loop_exit
      _
    %370 = vsyncpa [#allocation6], 1
    %s371 = scalar_lea.sflag [#allocation6], 1
    %372 = vsyncpa %s371, 1
    %373 = vsyncpa [#allocation7], 1
    %s374 = scalar_lea.sflag [#allocation7], 1
    %375 = vsyncpa %s374, 1

</llo_original>
